<compile_context>
chip_gen: v5e
topology: v5e:2x2
jax: 0.10.0
libtpu: 0.0.40
codegen_flags: <defaults>
</compile_context>

<pallas_src>
import jax
import jax.numpy as jnp
from jax.experimental import pallas as pl
from jax.experimental.pallas import tpu as pltpu


# ---------------------------------------------------------------------------
# Kernels
# ---------------------------------------------------------------------------
def gcn_first_kernel(a_ref, xw_ref, b_ref, o_ref):
    """conv1 + ReLU for one tile of node rows, with (A@X)@W reordered to A@(X@W).

    a_ref : [TM, Np] bf16 row tile of normalized adjacency (streamed)
    xw_ref: [Np, Fp] bf16 precomputed X @ W1 (VMEM resident)
    b_ref : [1,  Fp] f32
    o_ref : [TM, Fp] bf16
    """
    agg = jnp.dot(a_ref[...], xw_ref[...], preferred_element_type=jnp.float32)
    o_ref[...] = jnp.maximum(agg + b_ref[...], 0.0).astype(o_ref.dtype)


def gcn_mid_kernel(a_ref, h_ref, w_ref, b_ref, o_ref):
    """GraphConv + ReLU: o = relu((A_tile @ H) @ W + b); H/W kept bf16 at rest."""
    agg = jnp.dot(a_ref[...], h_ref[...], preferred_element_type=jnp.float32)
    z = jnp.dot(agg.astype(jnp.bfloat16), w_ref[...],
                preferred_element_type=jnp.float32) + b_ref[...]
    o_ref[...] = jnp.maximum(z, 0.0).astype(o_ref.dtype)


def gcn_last_kernel(am_ref, a_ref, h_ref, w_ref, b_ref, p_ref):
    """Third GraphConv (+ReLU) fused with the graph-readout partial.

    Emits p_i = a_mean[tile_i]^T @ relu((A_tile @ H) @ W + b)  as a lane-dense
    [8, Fp] block (partial replicated across sublanes); the collapsed
    conv3 + Linear + mean_nodes head is finished outside the kernel, so the
    full H3 is never written to HBM.
    am_ref: [TM, 1] f32  column slice of (1/N) * 1^T A_norm.
    """
    agg = jnp.dot(a_ref[...], h_ref[...], preferred_element_type=jnp.float32)
    z = jnp.dot(agg.astype(jnp.bfloat16), w_ref[...],
                preferred_element_type=jnp.float32) + b_ref[...]
    h3 = jnp.maximum(z, 0.0)                                    # [TM, Fp] f32
    part = jnp.sum(am_ref[...] * h3, axis=0, keepdims=True)     # [1, Fp]
    p_ref[...] = jnp.broadcast_to(part, p_ref.shape)            # [8, Fp]


# ---------------------------------------------------------------------------
# Tiling / VMEM helpers
# ---------------------------------------------------------------------------
def _round_up(x, m):
    return ((x + m - 1) // m) * m


def _pad2(a, rows, cols):
    r, c = a.shape
    return jnp.pad(a, ((0, rows - r), (0, cols - c)))


def _vmem_budget_bytes():
    """Usable per-kernel VMEM target, generation-aware with a safe fallback."""
    try:
        phys = int(pltpu.get_tpu_info().vmem_capacity_bytes)
    except Exception:
        phys = 64 << 20            # conservative: v7x per-core physical VMEM
    return (phys * 3) // 4         # leave headroom for compiler scratch


def _choose_tiling(n, fp, budget_bytes):
    """Pick (row-tile TM, padded node count Np).

    Largest TM whose double-buffered bf16 A tiles + resident bf16 H + output
    tiles + weights fit in `budget_bytes`.  Np is padded to a multiple of TM,
    removing the N % TM divisibility cliff (padded rows/cols are zero).
    """
    n8 = _round_up(n, 8)
    candidates = [t for t in (1024, 512, 256, 128, 64, 32, 16, 8) if t <= n8] or [8]
    for tm in candidates:
        npad = _round_up(n, tm)
        need = (2 * tm * npad * 2        # A row tiles (bf16, double-buffered)
                + 2 * npad * fp * 2      # resident H / XW (bf16, assume 2 bufs)
                + 2 * tm * fp * 2        # output tiles (bf16, double-buffered)
                + 3 * fp * fp * 2        # weights + biases
                + (2 << 20))             # misc headroom
        if need <= budget_bytes:
            return tm, npad
    tm = candidates[-1]
    return tm, _round_up(n, tm)


def _layer_params(vmem_limit):
    return pltpu.CompilerParams(
        dimension_semantics=("parallel",),       # independent row tiles (megacore)
        vmem_limit_bytes=int(vmem_limit))


# ---------------------------------------------------------------------------
# pallas_call wrappers
# ---------------------------------------------------------------------------
def _gcn_first(a_bf16, xw_bf16, b, *, tm, vmem_limit):
    npad = a_bf16.shape[0]
    fp = xw_bf16.shape[1]
    return pl.pallas_call(
        gcn_first_kernel,
        out_shape=jax.ShapeDtypeStruct((npad, fp), jnp.bfloat16),
        grid_spec=pltpu.PrefetchScalarGridSpec(
            num_scalar_prefetch=0,
            grid=(npad // tm,),
            in_specs=[
                pl.BlockSpec((tm, npad), lambda i: (i, 0)),    # A tile (streamed)
                pl.BlockSpec((npad, fp), lambda i: (0, 0)),    # X@W1 (resident)
                pl.BlockSpec((1, fp), lambda i: (0, 0)),       # bias
            ],
            out_specs=pl.BlockSpec((tm, fp), lambda i: (i, 0)),
        ),
        compiler_params=_layer_params(vmem_limit),
    )(a_bf16, xw_bf16, b)


def _gcn_mid(a_bf16, h_bf16, w_bf16, b, *, tm, vmem_limit):
    npad = a_bf16.shape[0]
    fp = h_bf16.shape[1]
    return pl.pallas_call(
        gcn_mid_kernel,
        out_shape=jax.ShapeDtypeStruct((npad, fp), jnp.bfloat16),
        grid_spec=pltpu.PrefetchScalarGridSpec(
            num_scalar_prefetch=0,
            grid=(npad // tm,),
            in_specs=[
                pl.BlockSpec((tm, npad), lambda i: (i, 0)),    # A tile
                pl.BlockSpec((npad, fp), lambda i: (0, 0)),    # H (resident, bf16)
                pl.BlockSpec((fp, fp), lambda i: (0, 0)),      # W (bf16)
                pl.BlockSpec((1, fp), lambda i: (0, 0)),       # bias
            ],
            out_specs=pl.BlockSpec((tm, fp), lambda i: (i, 0)),
        ),
        compiler_params=_layer_params(vmem_limit),
    )(a_bf16, h_bf16, w_bf16, b)


def _gcn_last(am_col, a_bf16, h_bf16, w_bf16, b, *, tm, vmem_limit):
    npad = a_bf16.shape[0]
    fp = h_bf16.shape[1]
    nt = npad // tm
    return pl.pallas_call(
        gcn_last_kernel,
        out_shape=jax.ShapeDtypeStruct((nt * 8, fp), jnp.float32),
        grid_spec=pltpu.PrefetchScalarGridSpec(
            num_scalar_prefetch=0,
            grid=(nt,),
            in_specs=[
                pl.BlockSpec((tm, 1), lambda i: (i, 0)),       # a_mean column tile
                pl.BlockSpec((tm, npad), lambda i: (i, 0)),    # A tile
                pl.BlockSpec((npad, fp), lambda i: (0, 0)),    # H (resident, bf16)
                pl.BlockSpec((fp, fp), lambda i: (0, 0)),      # W (bf16)
                pl.BlockSpec((1, fp), lambda i: (0, 0)),       # bias
            ],
            out_specs=pl.BlockSpec((8, fp), lambda i: (i, 0)), # per-tile partial
        ),
        compiler_params=_layer_params(vmem_limit),
    )(am_col, a_bf16, h_bf16, w_bf16, b)


# ---------------------------------------------------------------------------
# Forward pass
# ---------------------------------------------------------------------------
def gcn_forward(a_norm, x, params):
    """params = (w1, b1, w2, b2, w3, b3, wo, bo). Returns [1, 1] graph readout."""
    w1, b1, w2, b2, w3, b3, wo, bo = params
    n = a_norm.shape[0]
    in_feats = x.shape[1]
    h_feats = w1.shape[1]
    out_feats = w3.shape[1]

    fp = _round_up(h_feats, 128)                  # lane-dense hidden width
    budget = _vmem_budget_bytes()
    tm, npad = _choose_tiling(n, fp, budget)

    # Zero-pad the graph to Np x Np. Padded rows/cols of A and padded entries
    # of a_mean are exactly zero, so padded nodes never affect real nodes or
    # the mean readout.
    a_pad = jnp.pad(a_norm.astype(jnp.float32), ((0, npad - n), (0, npad - n)))
    a_bf16 = a_pad.astype(jnp.bfloat16)           # halves the dominant A stream
    x_pad = jnp.pad(x.astype(jnp.float32), ((0, npad - n), (0, 0)))

    # (1/N) * 1^T A as a column vector (f32; padded entries are zero).
    am_col = (a_pad.sum(axis=0) / n).reshape(npad, 1)

    # Zero-pad hidden dims so layer outputs are full-lane stores; weights bf16.
    w1p = _pad2(w1, in_feats, fp)
    b1p = _pad2(b1, 1, fp).astype(jnp.float32)
    w2p = _pad2(w2, fp, fp).astype(jnp.bfloat16)
    b2p = _pad2(b2, 1, fp).astype(jnp.float32)
    w3p = _pad2(w3, fp, out_feats)

    # conv1 reorder: A@(X@W1). The tiny K=in_feats matmul runs in XLA so the
    # kernels see a full-128-lane bf16 operand from the first layer.
    xw1 = (x_pad @ w1p).astype(jnp.bfloat16)

    h = _gcn_first(a_bf16, xw1, b1p, tm=tm, vmem_limit=budget)           # conv1 + act
    h = _gcn_mid(a_bf16, h, w2p, b2p, tm=tm, vmem_limit=budget)          # conv2 + act
    parts = _gcn_last(am_col, a_bf16, h, w2p, b2p, tm=tm, vmem_limit=budget)  # conv2 + act + readout partials

    # Collapsed conv3 + Linear(out_feats, 1) + mean_nodes, finished in JAX:
    #   mean_n(A@(H3@W3)+b3)@Wo + bo == (a_mean@H3)@(W3@Wo) + b3@Wo + bo
    partial = parts[::8].sum(axis=0, keepdims=True)                      # [1, Fp]
    wc = w3p.astype(jnp.float32) @ wo.astype(jnp.float32)                # [Fp, 1]
    c = b3.astype(jnp.float32) @ wo.astype(jnp.float32) + bo             # [1, 1]
    return partial @ wc + c


# ---------------------------------------------------------------------------
# Demo / self-check
# ---------------------------------------------------------------------------
if __name__ == "__main__":
    N, in_feats, h_feats, out_feats = 200, 4, 32, 16

    key = jax.random.PRNGKey(0)
    k_adj, k1, k2, k3, k4 = jax.random.split(key, 5)

    # Deterministic undirected graph (no self-loops) + ring so no node is isolated.
    logits = jax.random.uniform(k_adj, (N, N))
    adj = ((logits + logits.T) > 1.0).astype(jnp.float32)
    adj = adj * (1.0 - jnp.eye(N, dtype=jnp.float32))
    ring = (jnp.eye(N, k=1) + jnp.eye(N, k=-1)
            + jnp.eye(N, k=N - 1) + jnp.eye(N, k=-(N - 1))).astype(jnp.float32)
    adj = jnp.clip(adj + ring, 0.0, 1.0)

    deg = adj.sum(axis=1)
    d_inv_sqrt = 1.0 / jnp.sqrt(deg)
    a_norm = adj * d_inv_sqrt[:, None] * d_inv_sqrt[None, :]

    def winit(k, shape):
        fan_in = shape[0]
        return jax.random.normal(k, shape, jnp.float32) * jnp.sqrt(1.0 / fan_in)

    w1 = winit(k1, (in_feats, h_feats));  b1 = jnp.zeros((1, h_feats), jnp.float32)
    w2 = winit(k2, (h_feats, h_feats));   b2 = jnp.zeros((1, h_feats), jnp.float32)
    w3 = winit(k3, (h_feats, out_feats)); b3 = jnp.zeros((1, out_feats), jnp.float32)
    wo = winit(k4, (out_feats, 1));       bo = jnp.zeros((1, 1), jnp.float32)

    x = jax.random.normal(jax.random.PRNGKey(1), (N, in_feats), jnp.float32)
    params = (w1, b1, w2, b2, w3, b3, wo, bo)

    out = gcn_forward(a_norm, x, params)
    out = jax.block_until_ready(out)
    assert out.shape == (1, 1)

    # Pure-JAX reference of the original (uncollapsed) forward pass.
    def reference(a, x, params):
        w1, b1, w2, b2, w3, b3, wo, bo = params
        h = jax.nn.relu(a @ (x @ w1) + b1)
        h = jax.nn.relu(a @ (h @ w2) + b2)
        h = jax.nn.relu(a @ (h @ w2) + b2)
        h = a @ (h @ w3) + b3
        h = h @ wo + bo
        return h.mean(axis=0, keepdims=True)

    ref = jax.block_until_ready(reference(a_norm, x, params))
    # Loose tolerance: adjacency / weights are streamed in bf16 (f32 accumulate).
    assert jnp.allclose(out, ref, rtol=1e-1, atol=1e-1), (out, ref)

    print("KERNEL_OK")
</pallas_src>

<mosaic_0001>
module attributes {stable_mosaic.version = 11 : i64} {
  func.func @gcn_first_kernel(%arg0: i32, %arg1: memref<128x256xbf16, #tpu.memory_space<vmem>>, %arg2: memref<256x128xbf16, #tpu.memory_space<vmem>>, %arg3: memref<1x128xf32, #tpu.memory_space<vmem>>, %arg4: memref<128x128xbf16, #tpu.memory_space<vmem>>) attributes {dimension_semantics = [#tpu.dimension_semantics<parallel>], iteration_bounds = array<i64: 2>, scalar_prefetch = 0 : i64, scratch_operands = 0 : i64, tpu.core_type = #tpu.core_type<tc>, window_params = [{transform_indices = @transform_0, window_bounds = array<i64: 128, 256>}, {pipeline_mode = #tpu.pipeline_mode<synchronous>, transform_indices = @transform_1, window_bounds = array<i64: 256, 128>}, {pipeline_mode = #tpu.pipeline_mode<synchronous>, transform_indices = @transform_2, window_bounds = array<i64: 1, 128>}, {transform_indices = @transform_3, window_bounds = array<i64: 128, 128>}]} {
    %c0 = arith.constant 0 : index
    %c0_0 = arith.constant 0 : index
    %0 = vector.load %arg1[%c0, %c0_0] : memref<128x256xbf16, #tpu.memory_space<vmem>>, vector<128x256xbf16>
    %c0_1 = arith.constant 0 : index
    %c0_2 = arith.constant 0 : index
    %1 = vector.load %arg2[%c0_1, %c0_2] : memref<256x128xbf16, #tpu.memory_space<vmem>>, vector<256x128xbf16>
    %cst = arith.constant dense<0.000000e+00> : vector<128x128xf32>
    %2 = tpu.matmul %0, %1, %cst {dimension_numbers = #tpu.dot_dimension_numbers<[1], [0], [0], [1], [0, 0, 1, 1], [], []>} : vector<128x256xbf16>, vector<256x128xbf16>, vector<128x128xf32> -> vector<128x128xf32>
    %c0_3 = arith.constant 0 : index
    %c0_4 = arith.constant 0 : index
    %3 = vector.load %arg3[%c0_3, %c0_4] : memref<1x128xf32, #tpu.memory_space<vmem>>, vector<1x128xf32>
    %4 = vector.broadcast %3 : vector<1x128xf32> to vector<128x128xf32>
    %5 = arith.addf %2, %4 : vector<128x128xf32>
    %cst_5 = arith.constant 0.000000e+00 : f32
    %6 = vector.broadcast %cst_5 : f32 to vector<128x128xf32>
    %7 = arith.maximumf %5, %6 : vector<128x128xf32>
    %8 = arith.truncf %7 : vector<128x128xf32> to vector<128x128xbf16>
    %c0_6 = arith.constant 0 : index
    %c0_7 = arith.constant 0 : index
    %9 = vector.load %arg4[%c0_6, %c0_7] : memref<128x128xbf16, #tpu.memory_space<vmem>>, vector<128x128xbf16>
    tpu.vector_store %arg4[%c0_6, %c0_7], %8 {strides = array<i32>} : memref<128x128xbf16, #tpu.memory_space<vmem>>, vector<128x128xbf16>,
    return
  }
  func.func @transform_0(%arg0: i32) -> (i32, i32) {
    %c0_i32 = arith.constant 0 : i32
    %c0_i32_0 = arith.constant 0 : i32
    return %arg0, %c0_i32 : i32, i32
  }
  func.func @transform_1(%arg0: i32) -> (i32, i32) {
    %c0_i32 = arith.constant 0 : i32
    %c0_i32_0 = arith.constant 0 : i32
    %c0_i32_1 = arith.constant 0 : i32
    return %c0_i32, %c0_i32_0 : i32, i32
  }
  func.func @transform_2(%arg0: i32) -> (i32, i32) {
    %c0_i32 = arith.constant 0 : i32
    %c0_i32_0 = arith.constant 0 : i32
    %c0_i32_1 = arith.constant 0 : i32
    return %c0_i32, %c0_i32_0 : i32, i32
  }
  func.func @transform_3(%arg0: i32) -> (i32, i32) {
    %c0_i32 = arith.constant 0 : i32
    %c0_i32_0 = arith.constant 0 : i32
    return %arg0, %c0_i32 : i32, i32
  }
}

</mosaic_0001>

<llo_original>
// kernel: tpu_custom_call.1
$region0: #{tpu_custom_call.1}
  #allocation0 [shape = 'u32[]', space=smem, size = 0x4, offset = 0x4, fixed_abs, tag = 'smem constant byte address 0x4 - core index']
  #allocation1 [shape = 'u32[72,128]{1,0:T(1,128)}', space=vmem, size = 0x9000, scoped, tag = 'internal scratch']
  %s0 = inlined_call_operand.hbm [shape: bf16[256,256], index: 0, kind: input, shape index: {}]
  %s1 = inlined_call_operand.hbm [shape: bf16[256,128], index: 1, kind: input, shape index: {}]
  %s2 = inlined_call_operand.vmem [shape: f32[1,128], index: 2, kind: input, shape index: {}]
  %s3 = inlined_call_operand.hbm [shape: bf16[256,128], index: 3, kind: output, shape index: {}]
  %s4 = sld [smem:[#allocation0]]
  $region53: #{tpu_custom_call.1} parent=0
    _
  %s6 = ssub.s32 1, %s4
  %s7 = scalar_select 0, %s6, %s4
  $region1: #{tpu_custom_call.1} parent=0
    #allocation2 [shape = 'u8[131072]{0}', space=vmem, size = 0x20000, scoped, tag = 'input window, operand 0']
    #allocation3 [shape = 's32[2]{0}', space=sflag, size = 0x8, scoped, tag = 'scoped memory for tpu_custom_call.1']
    #allocation4 [shape = 's32[2]{0}', space=sflag, size = 0x8, scoped, tag = 'scoped memory for tpu_custom_call.1']
    #allocation5 [shape = 'u8[65536]{0}', space=vmem, size = 0x10000, scoped, tag = 'input window, operand 1, single buffered']
    #allocation6 [shape = 's32[1]{0}', space=sflag, size = 0x4, scoped, tag = 'scoped memory for tpu_custom_call.1']
    #allocation7 [shape = 'u8[65536]{0}', space=vmem, size = 0x10000, scoped, tag = 'output window, operand 0']
    %8 = vsyncpa [#allocation3], 0
    %s9 = scalar_lea.sflag [#allocation3], 1
    %10 = vsyncpa %s9, 0
    %11 = vsyncpa [#allocation6], 0
    %12 = vsyncpa [#allocation4], 0
    %s13 = scalar_lea.sflag [#allocation4], 1
    %14 = vsyncpa %s13, 0
    loop: start=0, step=1, limit=4
    $region2: #{tpu_custom_call.1} parent=1 // loop_pre_header
      _
    $region3: #{tpu_custom_call.1} parent=1 // loop_header
      %s16 = sphi 0, %s20
      %p17 = scmp.ge.s32.totalorder %s16, 4
      %s26 = sphi 0, %s28
      %s29 = sphi 0, %s26
      %s30 = sphi 0, %s29
      %s46 = sphi 0, %s30
      %s50 = sphi 0, %s50
      %s52 = sphi 0, %s50
      %s53 = sphi 0, %s52
      %s67 = sphi 0, %s53
      %s71 = sphi 0, %s71
      %s73 = sphi 0, %s71
      %s74 = sphi 0, %s73
      %s88 = sphi 0, %s74
      %s94 = sphi 0, %s96
      %s97 = sphi 0, %s94
      %s98 = sphi 0, %s97
      %s114 = sphi 0, %s98
    $region4: #{tpu_custom_call.1} parent=1 // loop_header_branch
      %19 = sbr.rel (%p17) target = $region8
    $region5: #{tpu_custom_call.1} parent=1 // loop_body
      %s21 = ssub.s32 %s16, 1
      %s22 = ssub.s32 %s16, 2
      %s23 = sadd.s32 %s16, 1
      %s24 = ssub.s32 %s16, %s23
      %p25 = scmp.eq.s32.totalorder %s24, 0
      %s27 = sadd.s32 %s26, 1
      %s28 = scalar_select %p25, %s26, %s27
      %p31 = pneg %p25
      %p32 = scmp.eq.s32.totalorder %s16, 1
      %p33 = por %p31, %p32
      %p34 = scmp.ne.s32.totalorder %s26, %s29
      %p35 = scmp.eq.s32.totalorder %s16, 0
      %p36 = por %p34, %p35
      %p37 = scmp.ne.s32.totalorder %s26, %s29
      %p38 = scmp.eq.s32.totalorder %s21, 1
      %p39 = por %p37, %p38
      %p40 = scmp.ne.s32.totalorder %s29, %s30
      %p41 = scmp.eq.s32.totalorder %s21, 0
      %p42 = por %p40, %p41
      %p43 = scmp.ne.s32.totalorder %s29, %s30
      %p44 = scmp.eq.s32.totalorder %s22, 1
      %p45 = por %p43, %p44
      %p47 = scmp.ne.s32.totalorder %s30, %s46
      %p48 = scmp.eq.s32.totalorder %s22, 0
      %p49 = por %p47, %p48
      %s51 = sadd.s32 %s50, 1
      %p54 = scmp.eq.s32.totalorder %s16, 1
      %p55 = scmp.ne.s32.totalorder %s50, %s52
      %p56 = scmp.eq.s32.totalorder %s16, 0
      %p57 = por %p55, %p56
      %p58 = scmp.ne.s32.totalorder %s50, %s52
      %p59 = scmp.eq.s32.totalorder %s21, 1
      %p60 = por %p58, %p59
      %p61 = scmp.ne.s32.totalorder %s52, %s53
      %p62 = scmp.eq.s32.totalorder %s21, 0
      %p63 = por %p61, %p62
      %p64 = scmp.ne.s32.totalorder %s52, %s53
      %p65 = scmp.eq.s32.totalorder %s22, 1
      %p66 = por %p64, %p65
      %p68 = scmp.ne.s32.totalorder %s53, %s67
      %p69 = scmp.eq.s32.totalorder %s22, 0
      %p70 = por %p68, %p69
      %s72 = sadd.s32 %s71, 1
      %p75 = scmp.eq.s32.totalorder %s16, 1
      %p76 = scmp.ne.s32.totalorder %s71, %s73
      %p77 = scmp.eq.s32.totalorder %s16, 0
      %p78 = por %p76, %p77
      %p79 = scmp.ne.s32.totalorder %s71, %s73
      %p80 = scmp.eq.s32.totalorder %s21, 1
      %p81 = por %p79, %p80
      %p82 = scmp.ne.s32.totalorder %s73, %s74
      %p83 = scmp.eq.s32.totalorder %s21, 0
      %p84 = por %p82, %p83
      %p85 = scmp.ne.s32.totalorder %s73, %s74
      %p86 = scmp.eq.s32.totalorder %s22, 1
      %p87 = por %p85, %p86
      %p89 = scmp.ne.s32.totalorder %s74, %s88
      %p90 = scmp.eq.s32.totalorder %s22, 0
      %p91 = por %p89, %p90
      %s92 = ssub.s32 %s16, %s23
      %p93 = scmp.eq.s32.totalorder %s92, 0
      %s95 = sadd.s32 %s94, 1
      %s96 = scalar_select %p93, %s94, %s95
      %p99 = pneg %p93
      %p100 = scmp.eq.s32.totalorder %s16, 1
      %p101 = por %p99, %p100
      %p102 = scmp.ne.s32.totalorder %s94, %s97
      %p103 = scmp.eq.s32.totalorder %s16, 0
      %p104 = por %p102, %p103
      %p105 = scmp.ne.s32.totalorder %s94, %s97
      %p106 = scmp.eq.s32.totalorder %s21, 1
      %p107 = por %p105, %p106
      %p108 = scmp.ne.s32.totalorder %s97, %s98
      %p109 = scmp.eq.s32.totalorder %s21, 0
      %p110 = por %p108, %p109
      %p111 = scmp.ne.s32.totalorder %s97, %s98
      %p112 = scmp.eq.s32.totalorder %s22, 1
      %p113 = por %p111, %p112
      %p115 = scmp.ne.s32.totalorder %s98, %s114
      %p116 = scmp.eq.s32.totalorder %s22, 0
      %p117 = por %p115, %p116
      %p118 = scmp.le.s32.totalorder 1, %s16
      %p119 = scmp.lt.s32.totalorder %s16, 3
      %p120 = pnand %p118, %p119
      %p121 = pneg %p120
      // Predicated region
      $region9: #{tpu_custom_call.1} parent=5 // pred_check
        _
      $region10: #{tpu_custom_call.1} parent=5 // pred_check_branch
        %123 = sbr.rel (%p120) target = $region12
      $region11: #{tpu_custom_call.1} parent=5 // pred_region
        %s124 = ssub.s32 %s16, 1
        // Predicated region
        $region13: #{tpu_custom_call.1} parent=11 // pred_check
          %p125 = pneg %p63
        $region14: #{tpu_custom_call.1} parent=11 // pred_check_branch
          %127 = sbr.rel (%p125) target = $region16
        $region15: #{tpu_custom_call.1} parent=11 // pred_region
          %129 = vsyncadd [#allocation6], 0
          %s130 = sshll.u32 %s1, 4
          %s131 = int_to_ptr.hbm [resolvable:$true] %s130
          %s132 = sshll.u32 [#allocation5], 4
          %s133 = int_to_ptr.vmem [resolvable:$true] %s132
          %138 = dma.hbm_to_vmem [thread:$0]  %s131, 2048, %s133, [#allocation6], 64, 64, 4
        $region16: #{tpu_custom_call.1} parent=11 // pred_fallthru
          _
        // Predicated region
        $region17: #{tpu_custom_call.1} parent=11 // pred_check
          %p139 = pneg %p84
        $region18: #{tpu_custom_call.1} parent=11 // pred_check_branch
          %141 = sbr.rel (%p139) target = $region20
        $region19: #{tpu_custom_call.1} parent=11 // pred_region
          _
        $region20: #{tpu_custom_call.1} parent=11 // pred_fallthru
          _
      $region12: #{tpu_custom_call.1} parent=5 // pred_fallthru
        _
      %p142 = scmp.lt.s32.totalorder %s16, 2
      // Predicated region
      $region21: #{tpu_custom_call.1} parent=5 // pred_check
        %p143 = pneg %p142
      $region22: #{tpu_custom_call.1} parent=5 // pred_check_branch
        %145 = sbr.rel (%p143) target = $region24
      $region23: #{tpu_custom_call.1} parent=5 // pred_region
        // Predicated region
        $region25: #{tpu_custom_call.1} parent=23 // pred_check
          %p146 = pneg %p36
        $region26: #{tpu_custom_call.1} parent=23 // pred_check_branch
          %148 = sbr.rel (%p146) target = $region28
        $region27: #{tpu_custom_call.1} parent=23 // pred_region
          %s149 = sand.u32 %s26, 1
          %s150 = scalar_lea.sflag [#allocation3], %s149
          %s151 = sand.u32 %s26, 1
          %s152 = smul.addr %s151, 128
          %s153 = scalar_lea.vmem [#allocation2], %s152
          %s154 = smul.u32 16, %s16
          %156 = vsyncadd %s150, 0
          %s157 = smul.addr %s154, 2
          %s158 = smul.addr %s157, 4
          %s159 = scalar_lea.hbm %s0, %s158
          %s160 = sshll.u32 %s159, 4
          %s161 = int_to_ptr.hbm [resolvable:$true] %s160
          %s162 = sshll.u32 %s153, 4
          %s163 = int_to_ptr.vmem [resolvable:$true] %s162
          %168 = dma.hbm_to_vmem [thread:$0]  %s161, 2048, %s163, %s150, 128, 128, 8
        $region28: #{tpu_custom_call.1} parent=23 // pred_fallthru
          _
      $region24: #{tpu_custom_call.1} parent=5 // pred_fallthru
        _
      %p169 = scmp.le.s32.totalorder 1, %s16
      %p170 = scmp.lt.s32.totalorder %s16, 3
      %p171 = pnand %p169, %p170
      %p172 = pneg %p171
      // Predicated region
      $region29: #{tpu_custom_call.1} parent=5 // pred_check
        _
      $region30: #{tpu_custom_call.1} parent=5 // pred_check_branch
        %174 = sbr.rel (%p171) target = $region32
      $region31: #{tpu_custom_call.1} parent=5 // pred_region
        %s175 = ssub.s32 %s16, 1
        %s176 = sand.u32 %s29, 1
        %s177 = scalar_lea.sflag [#allocation3], %s176
        %s178 = sand.u32 %s29, 1
        %s179 = smul.addr %s178, 128
        %s180 = scalar_lea.vmem [#allocation2], %s179
        // Predicated region
        $region33: #{tpu_custom_call.1} parent=31 // pred_check
          %p181 = pneg %p42
        $region34: #{tpu_custom_call.1} parent=31 // pred_check_branch
          %183 = sbr.rel (%p181) target = $region36
        $region35: #{tpu_custom_call.1} parent=31 // pred_region
          %185 = dma.done %s177, 2048
        $region36: #{tpu_custom_call.1} parent=31 // pred_fallthru
          _
        // Predicated region
        $region37: #{tpu_custom_call.1} parent=31 // pred_check
          %p186 = pneg %p63
        $region38: #{tpu_custom_call.1} parent=31 // pred_check_branch
          %188 = sbr.rel (%p186) target = $region40
        $region39: #{tpu_custom_call.1} parent=31 // pred_region
          %190 = dma.done [#allocation6], 2048
        $region40: #{tpu_custom_call.1} parent=31 // pred_fallthru
          _
        %s191 = sand.u32 %s29, 1
        %s192 = scalar_lea.sflag [#allocation3], %s191
        %s193 = sand.u32 %s29, 1
        %s194 = smul.addr %s193, 128
        %s195 = scalar_lea.vmem [#allocation2], %s194
        %p196 = pneg %p42
        %p197 = pneg %p39
        %p198 = pneg %p63
        %p199 = pneg %p60
        %p200 = pneg %p84
        %p201 = pneg %p81
        %p202 = pneg %p110
        %p203 = pneg %p107
        %s204 = sand.u32 %s97, 1
        %s205 = scalar_lea.sflag [#allocation4], %s204
        %s206 = sand.u32 %s97, 1
        %s207 = smul.addr %s206, 64
        %s208 = scalar_lea.vmem [#allocation7], %s207
        %s209 = smul.u32 16, %s21
        %s210 = smul.u32 16, %s21
        %v211 = vld [vmem:[%s180] sm:$0xff]
        %v212 = vld [vmem:[%s180 + $0x8] sm:$0xff]
        %v213 = vld [vmem:[%s180 + $0x10] sm:$0xff]
        %v214 = vld [vmem:[%s180 + $0x18] sm:$0xff]
        %v215 = vld [vmem:[%s180 + $0x20] sm:$0xff]
        %v216 = vld [vmem:[%s180 + $0x28] sm:$0xff]
        %v217 = vld [vmem:[%s180 + $0x30] sm:$0xff]
        %v218 = vld [vmem:[%s180 + $0x38] sm:$0xff]
        %v219 = vld [vmem:[%s180 + $0x40] sm:$0xff]
        %v220 = vld [vmem:[%s180 + $0x48] sm:$0xff]
        %v221 = vld [vmem:[%s180 + $0x50] sm:$0xff]
        %v222 = vld [vmem:[%s180 + $0x58] sm:$0xff]
        %v223 = vld [vmem:[%s180 + $0x60] sm:$0xff]
        %v224 = vld [vmem:[%s180 + $0x68] sm:$0xff]
        %v225 = vld [vmem:[%s180 + $0x70] sm:$0xff]
        %v226 = vld [vmem:[%s180 + $0x78] sm:$0xff]
        %v227 = vld [vmem:[#allocation5] sm:$0xf]
        %v228 = vld [vmem:[#allocation5 + $0x4] sm:$0xf]
        %v229 = vld [vmem:[#allocation5 + $0x8] sm:$0xf]
        %v230 = vld [vmem:[#allocation5 + $0xc] sm:$0xf]
        %v231 = vld [vmem:[#allocation5 + $0x10] sm:$0xf]
        %v232 = vld [vmem:[#allocation5 + $0x14] sm:$0xf]
        %v233 = vld [vmem:[#allocation5 + $0x18] sm:$0xf]
        %v234 = vld [vmem:[#allocation5 + $0x1c] sm:$0xf]
        %v235 = vld [vmem:[#allocation5 + $0x20] sm:$0xf]
        %v236 = vld [vmem:[#allocation5 + $0x24] sm:$0xf]
        %v237 = vld [vmem:[#allocation5 + $0x28] sm:$0xf]
        %v238 = vld [vmem:[#allocation5 + $0x2c] sm:$0xf]
        %v239 = vld [vmem:[#allocation5 + $0x30] sm:$0xf]
        %v240 = vld [vmem:[#allocation5 + $0x34] sm:$0xf]
        %v241 = vld [vmem:[#allocation5 + $0x38] sm:$0xf]
        %v242 = vld [vmem:[#allocation5 + $0x3c] sm:$0xf]
        %v243 = vld [vmem:[#allocation5 + $0x40] sm:$0xf]
        %v244 = vld [vmem:[#allocation5 + $0x44] sm:$0xf]
        %v245 = vld [vmem:[#allocation5 + $0x48] sm:$0xf]
        %v246 = vld [vmem:[#allocation5 + $0x4c] sm:$0xf]
        %v247 = vld [vmem:[#allocation5 + $0x50] sm:$0xf]
        %v248 = vld [vmem:[#allocation5 + $0x54] sm:$0xf]
        %v249 = vld [vmem:[#allocation5 + $0x58] sm:$0xf]
        %v250 = vld [vmem:[#allocation5 + $0x5c] sm:$0xf]
        %v251 = vld [vmem:[#allocation5 + $0x60] sm:$0xf]
        %v252 = vld [vmem:[#allocation5 + $0x64] sm:$0xf]
        %v253 = vld [vmem:[#allocation5 + $0x68] sm:$0xf]
        %v254 = vld [vmem:[#allocation5 + $0x6c] sm:$0xf]
        %v255 = vld [vmem:[#allocation5 + $0x70] sm:$0xf]
        %v256 = vld [vmem:[#allocation5 + $0x74] sm:$0xf]
        %v257 = vld [vmem:[#allocation5 + $0x78] sm:$0xf]
        %v258 = vld [vmem:[#allocation5 + $0x7c] sm:$0xf]
        %v259 = vld [vmem:[%s2] sm:$0x1]
        %v261 = vperm.slane %v259, 0
        %v279 = vunpack.c.l.b16 %v211
        %v280 = vunpack.c.h.b16 %v211
        %v281 = vunpack.c.l.b16 %v212
        %v282 = vunpack.c.h.b16 %v212
        %v283 = vunpack.c.l.b16 %v213
        %v284 = vunpack.c.h.b16 %v213
        %v285 = vunpack.c.l.b16 %v214
        %v286 = vunpack.c.h.b16 %v214
        %v287 = vunpack.c.l.b16 %v215
        %v288 = vunpack.c.h.b16 %v215
        %v289 = vunpack.c.l.b16 %v216
        %v290 = vunpack.c.h.b16 %v216
        %v291 = vunpack.c.l.b16 %v217
        %v292 = vunpack.c.h.b16 %v217
        %v293 = vunpack.c.l.b16 %v218
        %v294 = vunpack.c.h.b16 %v218
        %v295 = vunpack.c.l.b16 %v219
        %v296 = vunpack.c.h.b16 %v219
        %v297 = vunpack.c.l.b16 %v220
        %v298 = vunpack.c.h.b16 %v220
        %v299 = vunpack.c.l.b16 %v221
        %v300 = vunpack.c.h.b16 %v221
        %v301 = vunpack.c.l.b16 %v222
        %v302 = vunpack.c.h.b16 %v222
        %v303 = vunpack.c.l.b16 %v223
        %v304 = vunpack.c.h.b16 %v223
        %v305 = vunpack.c.l.b16 %v224
        %v306 = vunpack.c.h.b16 %v224
        %v307 = vunpack.c.l.b16 %v225
        %v308 = vunpack.c.h.b16 %v225
        %v309 = vunpack.c.l.b16 %v226
        %v310 = vunpack.c.h.b16 %v226
        %v311 = vpack.c.b16 %v281, %v279
        %v312 = vpack.c.b16 %v282, %v280
        %v313 = vpack.c.b16 %v285, %v283
        %v314 = vpack.c.b16 %v286, %v284
        %v315 = vpack.c.b16 %v289, %v287
        %v316 = vpack.c.b16 %v290, %v288
        %v317 = vpack.c.b16 %v293, %v291
        %v318 = vpack.c.b16 %v294, %v292
        %v319 = vpack.c.b16 %v297, %v295
        %v320 = vpack.c.b16 %v298, %v296
        %v321 = vpack.c.b16 %v301, %v299
        %v322 = vpack.c.b16 %v302, %v300
        %v323 = vpack.c.b16 %v305, %v303
        %v324 = vpack.c.b16 %v306, %v304
        %v325 = vpack.c.b16 %v309, %v307
        %v326 = vpack.c.b16 %v310, %v308
        %v375 = vunpack.c.l.b16 %v227
        %v376 = vunpack.c.l.b16 %v228
        %v377 = vunpack.c.l.b16 %v229
        %v378 = vunpack.c.l.b16 %v230
        %v379 = vunpack.c.l.b16 %v231
        %v380 = vunpack.c.l.b16 %v232
        %v381 = vunpack.c.l.b16 %v233
        %v382 = vunpack.c.l.b16 %v234
        %v383 = vunpack.c.l.b16 %v235
        %v384 = vunpack.c.l.b16 %v236
        %v385 = vunpack.c.l.b16 %v237
        %v386 = vunpack.c.l.b16 %v238
        %v387 = vunpack.c.l.b16 %v239
        %v388 = vunpack.c.l.b16 %v240
        %v389 = vunpack.c.l.b16 %v241
        %v390 = vunpack.c.l.b16 %v242
        %v391 = vunpack.c.l.b16 %v243
        %v392 = vunpack.c.l.b16 %v244
        %v393 = vunpack.c.l.b16 %v245
        %v394 = vunpack.c.l.b16 %v246
        %v395 = vunpack.c.l.b16 %v247
        %v396 = vunpack.c.l.b16 %v248
        %v397 = vunpack.c.l.b16 %v249
        %v398 = vunpack.c.l.b16 %v250
        %v399 = vunpack.c.l.b16 %v251
        %v400 = vunpack.c.l.b16 %v252
        %v401 = vunpack.c.l.b16 %v253
        %v402 = vunpack.c.l.b16 %v254
        %v403 = vunpack.c.l.b16 %v255
        %v404 = vunpack.c.l.b16 %v256
        %v405 = vunpack.c.l.b16 %v257
        %v406 = vunpack.c.l.b16 %v258
        %v407 = vpack.c.b16 %v376, %v375
        %v408 = vpack.c.b16 %v378, %v377
        %v409 = vpack.c.b16 %v380, %v379
        %v410 = vpack.c.b16 %v382, %v381
        %v411 = vpack.c.b16 %v384, %v383
        %v412 = vpack.c.b16 %v386, %v385
        %v413 = vpack.c.b16 %v388, %v387
        %v414 = vpack.c.b16 %v390, %v389
        %v415 = vpack.c.b16 %v392, %v391
        %v416 = vpack.c.b16 %v394, %v393
        %v417 = vpack.c.b16 %v396, %v395
        %v418 = vpack.c.b16 %v398, %v397
        %v419 = vpack.c.b16 %v400, %v399
        %v420 = vpack.c.b16 %v402, %v401
        %v421 = vpack.c.b16 %v404, %v403
        %v422 = vpack.c.b16 %v406, %v405
        %439 = vmatpush.bf16.msra.mxu0 %v414
        %440 = vmatpush.bf16.msra.mxu0 %v413
        %441 = vmatpush.bf16.msra.mxu0 %v412
        %442 = vmatpush.bf16.msra.mxu0 %v411
        %443 = vmatpush.bf16.msra.mxu0 %v410
        %444 = vmatpush.bf16.msra.mxu0 %v409
        %445 = vmatpush.bf16.msra.mxu0 %v408
        %446 = vmatpush.bf16.msra.mxu0 %v407
        %447 = vmatmul.bf16.gmra.mxu0 %v311
        %v448 = vpop.f32.mrf.mxu0
        %v449 = vadd.f32 %v261, %v448
        %v450 = vpop.f32.mrf.mxu0
        %v451 = vadd.f32 %v261, %v450
        %452 = vmatmul.bf16.gmra.mxu0 %v313
        %v453 = vpop.f32.mrf.mxu0
        %v454 = vadd.f32 %v261, %v453
        %v455 = vpop.f32.mrf.mxu0
        %v456 = vadd.f32 %v261, %v455
        %457 = vmatmul.bf16.gmra.mxu0 %v315
        %v458 = vpop.f32.mrf.mxu0
        %v459 = vadd.f32 %v261, %v458
        %v460 = vpop.f32.mrf.mxu0
        %v461 = vadd.f32 %v261, %v460
        %462 = vmatmul.bf16.gmra.mxu0 %v317
        %v463 = vpop.f32.mrf.mxu0
        %v464 = vadd.f32 %v261, %v463
        %v465 = vpop.f32.mrf.mxu0
        %v466 = vadd.f32 %v261, %v465
        %467 = vmatmul.bf16.gmra.mxu0 %v319
        %v468 = vpop.f32.mrf.mxu0
        %v469 = vadd.f32 %v261, %v468
        %v470 = vpop.f32.mrf.mxu0
        %v471 = vadd.f32 %v261, %v470
        %472 = vmatmul.bf16.gmra.mxu0 %v321
        %v473 = vpop.f32.mrf.mxu0
        %v474 = vadd.f32 %v261, %v473
        %v475 = vpop.f32.mrf.mxu0
        %v476 = vadd.f32 %v261, %v475
        %477 = vmatmul.bf16.gmra.mxu0 %v323
        %v478 = vpop.f32.mrf.mxu0
        %v479 = vadd.f32 %v261, %v478
        %v480 = vpop.f32.mrf.mxu0
        %v481 = vadd.f32 %v261, %v480
        %482 = vmatmul.bf16.gmra.mxu0 %v325
        %v483 = vpop.f32.mrf.mxu0
        %v484 = vadd.f32 %v261, %v483
        %v485 = vpop.f32.mrf.mxu0
        %v486 = vadd.f32 %v261, %v485
        %487 = vdwg.mxu0
        %488 = vmatpush.bf16.msra.mxu0 %v422
        %489 = vmatpush.bf16.msra.mxu0 %v421
        %490 = vmatpush.bf16.msra.mxu0 %v420
        %491 = vmatpush.bf16.msra.mxu0 %v419
        %492 = vmatpush.bf16.msra.mxu0 %v418
        %493 = vmatpush.bf16.msra.mxu0 %v417
        %494 = vmatpush.bf16.msra.mxu0 %v416
        %495 = vmatpush.bf16.msra.mxu0 %v415
        %496 = vmatmul.bf16.gmra.mxu0 %v312
        %v497 = vpop.f32.mrf.mxu0
        %v498 = vadd.f32 %v449, %v497
        %v499 = vpop.f32.mrf.mxu0
        %v500 = vadd.f32 %v451, %v499
        %501 = vmatmul.bf16.gmra.mxu0 %v314
        %v502 = vpop.f32.mrf.mxu0
        %v503 = vadd.f32 %v454, %v502
        %v504 = vpop.f32.mrf.mxu0
        %v505 = vadd.f32 %v456, %v504
        %506 = vmatmul.bf16.gmra.mxu0 %v316
        %v507 = vpop.f32.mrf.mxu0
        %v508 = vadd.f32 %v459, %v507
        %v509 = vpop.f32.mrf.mxu0
        %v510 = vadd.f32 %v461, %v509
        %511 = vmatmul.bf16.gmra.mxu0 %v318
        %v512 = vpop.f32.mrf.mxu0
        %v513 = vadd.f32 %v464, %v512
        %v514 = vpop.f32.mrf.mxu0
        %v515 = vadd.f32 %v466, %v514
        %516 = vmatmul.bf16.gmra.mxu0 %v320
        %v517 = vpop.f32.mrf.mxu0
        %v518 = vadd.f32 %v469, %v517
        %v519 = vpop.f32.mrf.mxu0
        %v520 = vadd.f32 %v471, %v519
        %521 = vmatmul.bf16.gmra.mxu0 %v322
        %v522 = vpop.f32.mrf.mxu0
        %v523 = vadd.f32 %v474, %v522
        %v524 = vpop.f32.mrf.mxu0
        %v525 = vadd.f32 %v476, %v524
        %526 = vmatmul.bf16.gmra.mxu0 %v324
        %v527 = vpop.f32.mrf.mxu0
        %v528 = vadd.f32 %v479, %v527
        %v529 = vpop.f32.mrf.mxu0
        %v530 = vadd.f32 %v481, %v529
        %531 = vmatmul.bf16.gmra.mxu0 %v326
        %v532 = vpop.f32.mrf.mxu0
        %v533 = vadd.f32 %v484, %v532
        %v534 = vpop.f32.mrf.mxu0
        %v535 = vadd.f32 %v486, %v534
        %536 = vdwg.mxu0
        %v537 = vmax.f32 %v498, 0.0
        %v538 = vmax.f32 %v500, 0.0
        %v539 = vmax.f32 %v503, 0.0
        %v540 = vmax.f32 %v505, 0.0
        %v541 = vmax.f32 %v508, 0.0
        %v542 = vmax.f32 %v510, 0.0
        %v543 = vmax.f32 %v513, 0.0
        %v544 = vmax.f32 %v515, 0.0
        %v545 = vmax.f32 %v518, 0.0
        %v546 = vmax.f32 %v520, 0.0
        %v547 = vmax.f32 %v523, 0.0
        %v548 = vmax.f32 %v525, 0.0
        %v549 = vmax.f32 %v528, 0.0
        %v550 = vmax.f32 %v530, 0.0
        %v551 = vmax.f32 %v533, 0.0
        %v552 = vmax.f32 %v535, 0.0
        %v553 = vpack.c.bf16 %v537, %v537
        %v554 = vpack.c.bf16 %v538, %v538
        %v555 = vpack.c.bf16 %v539, %v539
        %v556 = vpack.c.bf16 %v540, %v540
        %v557 = vpack.c.bf16 %v541, %v541
        %v558 = vpack.c.bf16 %v542, %v542
        %v559 = vpack.c.bf16 %v543, %v543
        %v560 = vpack.c.bf16 %v544, %v544
        %v561 = vpack.c.bf16 %v545, %v545
        %v562 = vpack.c.bf16 %v546, %v546
        %v563 = vpack.c.bf16 %v547, %v547
        %v564 = vpack.c.bf16 %v548, %v548
        %v565 = vpack.c.bf16 %v549, %v549
        %v566 = vpack.c.bf16 %v550, %v550
        %v567 = vpack.c.bf16 %v551, %v551
        %v568 = vpack.c.bf16 %v552, %v552
        %569 = vst [vmem:[%s208] sm:$0xf] %v553
        %570 = vst [vmem:[%s208 + $0x4] sm:$0xf] %v554
        %571 = vst [vmem:[%s208 + $0x8] sm:$0xf] %v555
        %572 = vst [vmem:[%s208 + $0xc] sm:$0xf] %v556
        %573 = vst [vmem:[%s208 + $0x10] sm:$0xf] %v557
        %574 = vst [vmem:[%s208 + $0x14] sm:$0xf] %v558
        %575 = vst [vmem:[%s208 + $0x18] sm:$0xf] %v559
        %576 = vst [vmem:[%s208 + $0x1c] sm:$0xf] %v560
        %577 = vst [vmem:[%s208 + $0x20] sm:$0xf] %v561
        %578 = vst [vmem:[%s208 + $0x24] sm:$0xf] %v562
        %579 = vst [vmem:[%s208 + $0x28] sm:$0xf] %v563
        %580 = vst [vmem:[%s208 + $0x2c] sm:$0xf] %v564
        %581 = vst [vmem:[%s208 + $0x30] sm:$0xf] %v565
        %582 = vst [vmem:[%s208 + $0x34] sm:$0xf] %v566
        %583 = vst [vmem:[%s208 + $0x38] sm:$0xf] %v567
        %584 = vst [vmem:[%s208 + $0x3c] sm:$0xf] %v568
        %s585 = sand.u32 %s97, 1
        %s586 = scalar_lea.sflag [#allocation4], %s585
        %s587 = sand.u32 %s97, 1
        %s588 = smul.addr %s587, 64
        %s589 = scalar_lea.vmem [#allocation7], %s588
        // Predicated region
        $region41: #{tpu_custom_call.1} parent=31 // pred_check
          %p590 = pneg %p107
        $region42: #{tpu_custom_call.1} parent=31 // pred_check_branch
          %592 = sbr.rel (%p590) target = $region44
        $region43: #{tpu_custom_call.1} parent=31 // pred_region
          %s593 = smul.u32 16, %s21
          %595 = vsyncadd %s586, 0
          %s596 = smul.addr %s593, 4
          %s597 = scalar_lea.hbm %s3, %s596
          %s598 = sshll.u32 %s589, 4
          %s599 = int_to_ptr.vmem [resolvable:$true] %s598
          %s600 = sshll.u32 %s597, 4
          %s601 = int_to_ptr.hbm [resolvable:$true] %s600
          %606 = dma.vmem_to_hbm [thread:$0]  %s599, 1024, %s601, %s586, 64, 64, 4
        $region44: #{tpu_custom_call.1} parent=31 // pred_fallthru
          _
      $region32: #{tpu_custom_call.1} parent=5 // pred_fallthru
        _
      %p607 = scmp.le.s32.totalorder 2, %s16
      // Predicated region
      $region45: #{tpu_custom_call.1} parent=5 // pred_check
        %p608 = pneg %p607
      $region46: #{tpu_custom_call.1} parent=5 // pred_check_branch
        %610 = sbr.rel (%p608) target = $region48
      $region47: #{tpu_custom_call.1} parent=5 // pred_region
        %s611 = ssub.s32 %s16, 2
        // Predicated region
        $region49: #{tpu_custom_call.1} parent=47 // pred_check
          %p612 = pneg %p113
        $region50: #{tpu_custom_call.1} parent=47 // pred_check_branch
          %614 = sbr.rel (%p612) target = $region52
        $region51: #{tpu_custom_call.1} parent=47 // pred_region
          %s615 = sand.u32 %s98, 1
          %s616 = scalar_lea.sflag [#allocation4], %s615
          %s617 = sand.u32 %s98, 1
          %s618 = smul.addr %s617, 64
          %s619 = scalar_lea.vmem [#allocation7], %s618
          %621 = dma.done %s616, 1024
        $region52: #{tpu_custom_call.1} parent=47 // pred_fallthru
          _
      $region48: #{tpu_custom_call.1} parent=5 // pred_fallthru
        _
    $region6: #{tpu_custom_call.1} parent=1 // loop_footer
      %s20 = sadd.s32 1, %s16
    $region7: #{tpu_custom_call.1} parent=1 // loop_footer_branch
      %15 = sbr.rel target = $region3
    $region8: #{tpu_custom_call.1} parent=1 // loop_exit
      _
    %622 = vsyncpa [#allocation3], 1
    %s623 = scalar_lea.sflag [#allocation3], 1
    %624 = vsyncpa %s623, 1
    %625 = vsyncpa [#allocation6], 1
    %626 = vsyncpa [#allocation4], 1
    %s627 = scalar_lea.sflag [#allocation4], 1
    %628 = vsyncpa %s627, 1

</llo_original>
